<compile_context>
chip_gen: v6e
topology: v6e:2x2x1
jax: 0.10.0
libtpu: 0.0.40
codegen_flags: <defaults>
</compile_context>

<pallas_src>
import functools
import math

import numpy as np
import jax
import jax.numpy as jnp
from jax.experimental import pallas as pl
from jax.experimental.pallas import tpu as pltpu


_MAX_BLOCK_BYTES = 4 * 1024 * 1024   # target size of one input tile (per buffer)
_VMEM_BUDGET = 24 * 1024 * 1024      # tiling budget (headroom under the scoped limit)
_VMEM_LIMIT = 32 * 1024 * 1024       # scoped VMEM limit passed to Mosaic


def _round_up(x, m):
    return -(-x // m) * m


def _divisors(n):
    small, large = [], []
    i = 1
    while i * i <= n:
        if n % i == 0:
            small.append(i)
            if i * i != n:
                large.append(n // i)
        i += 1
    large.reverse()
    return small + large


def _choose_tiling(batch, pixels, channels, itemsize):
    """Pick (S, TR, CHUNK) for the (B, H*W*C) mask viewed as (B*S, H*W*C/S).

    Constraints respected (so BlockSpec's (sublane, 128) rule always holds and
    the channel pattern is independent of the reduction step):
      * S divides H*W                       -> each row starts on a channel-0 pixel
      * TR  % sublane_unit == 0  or TR == B*S
      * CHUNK % lcm(128, C) == 0 or CHUNK == row length
    Preference: lane-dense, sublane-dense, >= 2 parallel row blocks (v7x
    megacore), biggest block <= 4 MiB, lane-longest chunk.  VMEM accounting
    uses *padded* sizes (double-buffered input + selector scratch + outputs).
    """
    sublane_unit = max(8, 32 // itemsize)                       # 8 f32 / 16 bf16 / 32 int8
    lane_unit = (128 * channels) // math.gcd(128, channels)     # lcm(128, C)

    best_key = best = fb_key = fb = None
    for split in _divisors(pixels):
        rows = batch * split
        if split > 1 and rows > 4096:
            continue
        row_len = (pixels // split) * channels

        tr_cands = {t for t in _divisors(rows) if t % sublane_unit == 0} | {rows}
        ck_cands = {c for c in _divisors(row_len) if c % lane_unit == 0} | {row_len}

        for tr in tr_cands:
            tr_pad = _round_up(tr, sublane_unit)
            for ck in ck_cands:
                ck_pad = _round_up(ck, 128)
                block_bytes = tr * ck * itemsize
                vmem = (2 * tr_pad * ck_pad * itemsize      # double-buffered input tile
                        + 8 * ck_pad * 4                    # (2, CHUNK) f32 selector scratch
                        + 4 * tr_pad * 128 * 4)             # two (TR, 1) f32 outputs, 2 bufs
                key = (
                    ck % 128 == 0,                 # lane-dense
                    tr % sublane_unit == 0,        # sublane-dense
                    (rows // tr) >= 2,             # >= 2 parallel blocks (v7x megacore)
                    block_bytes,                   # bigger block -> fewer grid steps
                    ck,                            # lane-longest chunk
                    -split,                        # prefer smaller fold, all else equal
                )
                if block_bytes <= _MAX_BLOCK_BYTES and vmem <= _VMEM_BUDGET:
                    if best_key is None or key > best_key:
                        best_key, best = key, (split, tr, ck)
                else:
                    fkey = (-vmem,) + key          # fallback: smallest VMEM footprint
                    if fb_key is None or fkey > fb_key:
                        fb_key, fb = fkey, (split, tr, ck)

    return best if best is not None else fb


def _make_infarct_kernel(num_channels, lv_index, infarct_index, chunk):
    def kernel(x_ref, inf_ref, lv_ref, sel_ref):
        k = pl.program_id(1)  # reduction axis over lane chunks

        @pl.when(k == 0)
        def _init():
            # Hoisted channel selector: CHUNK % C == 0, so a column's channel
            # id is col % C, independent of k and of the row.  Built once per
            # row block, reused every reduction step.
            col = jax.lax.broadcasted_iota(jnp.int32, (2, chunk), 1)
            row = jax.lax.broadcasted_iota(jnp.int32, (2, chunk), 0)
            target = jnp.where(row == 0, infarct_index, lv_index)
            sel_ref[...] = ((col % num_channels) == target).astype(jnp.float32)
            # Output refs double as accumulators (resident across k).
            inf_ref[...] = jnp.zeros_like(inf_ref)
            lv_ref[...] = jnp.zeros_like(lv_ref)

        x = x_ref[...].astype(jnp.float32)   # no-op for float32 masks
        sel = sel_ref[...]                   # (2, CHUNK)
        inf_ref[...] += jnp.sum(x * sel[0:1, :], axis=1, keepdims=True)
        lv_ref[...] += jnp.sum(x * sel[1:2, :], axis=1, keepdims=True)

    return kernel


@functools.partial(jax.jit, static_argnames=("lv_index", "infarct_index"))
def _infarct_area_ratio(segmentation_mask, lv_index, infarct_index):
    """segmentation_mask: (B, H, W, C) one-hot mask (any numeric dtype)."""
    x = segmentation_mask
    if x.dtype == jnp.bool_:
        # TODO(synk): a zero-copy bitcast view would avoid this extra HBM pass
        # for bool masks; XLA's PRED bit-width makes bitcast_convert_type
        # unreliable, so fall back to a cast.
        x = x.astype(jnp.int8)

    B, H, W, C = x.shape
    itemsize = jnp.dtype(x.dtype).itemsize
    split, tr, chunk = _choose_tiling(B, H * W, C, itemsize)
    rows = B * split
    row_len = (H * W // split) * C
    flat = x.reshape(rows, row_len)          # layout-compatible reshape: free under jit
    grid = (rows // tr, row_len // chunk)

    kernel = _make_infarct_kernel(
        C, lv_index=lv_index, infarct_index=infarct_index, chunk=chunk
    )

    inf_part, lv_part = pl.pallas_call(
        kernel,
        out_shape=(
            jax.ShapeDtypeStruct((rows, 1), jnp.float32),
            jax.ShapeDtypeStruct((rows, 1), jnp.float32),
        ),
        grid_spec=pltpu.PrefetchScalarGridSpec(
            num_scalar_prefetch=0,
            grid=grid,
            in_specs=[
                pl.BlockSpec((tr, chunk), lambda r, k: (r, k)),
            ],
            out_specs=(
                # Per-row-block outputs (not a resident whole-(rows,) buffer)
                # so the row axis can be sharded across TensorCores on v7x.
                pl.BlockSpec((tr, 1), lambda r, k: (r, 0)),
                pl.BlockSpec((tr, 1), lambda r, k: (r, 0)),
            ),
            scratch_shapes=[
                pltpu.VMEM((2, chunk), jnp.float32),  # hoisted channel selectors
            ],
        ),
        compiler_params=pltpu.CompilerParams(
            dimension_semantics=("parallel", "arbitrary"),
            vmem_limit_bytes=_VMEM_LIMIT,
        ),
    )(flat)

    # Tiny per-batch fold over the sublane split + safe divide (B*S elements).
    areas = inf_part.reshape(B, split).sum(axis=1)
    lv_areas = lv_part.reshape(B, split).sum(axis=1)
    denom = areas + lv_areas
    ratios = jnp.where(denom == 0.0, jnp.zeros_like(denom), areas / denom)
    return areas, ratios


class InfarctMetricsPallas:
    """JAX/Pallas port of InfarctMetrics.forward (area + ratio on TPU)."""

    def __init__(self, lv_index: int = 1, infarct_index: int = 2):
        self.lv_index = lv_index
        self.infarct_index = infarct_index

    def __call__(self, segmentation_mask, lv_index=None, infarct_index=None):
        if lv_index is None:
            lv_index = self.lv_index
        if infarct_index is None:
            infarct_index = self.infarct_index

        if segmentation_mask.ndim == 3:
            segmentation_mask = segmentation_mask[None]
        B = segmentation_mask.shape[0]

        areas, ratios = _infarct_area_ratio(
            segmentation_mask, lv_index=int(lv_index), infarct_index=int(infarct_index)
        )

        # TODO(synk): span / transmurality need OpenCV polar warps, connected
        # components, Canny + contours + minEnclosingCircle — no Pallas
        # equivalent; returning zeros instead of faking the geometry.
        spans = np.zeros((B,), dtype=np.float64)
        transmuralities = np.zeros((B,), dtype=np.float64)

        return {
            "infarct_area": areas,
            "ratio": ratios,
            "span": spans,
            "transmurality": transmuralities,
        }


if __name__ == "__main__":
    # Small shapes consistent with the module: one-hot mask (B, H, W, C).
    B, H, W, C = 2, 16, 16, 4
    key = jax.random.PRNGKey(0)
    labels = jax.random.randint(key, (B, H, W), minval=0, maxval=C)
    seg_mask = jax.nn.one_hot(labels, C, dtype=jnp.float32)  # (B, H, W, C)

    metrics = InfarctMetricsPallas(lv_index=1, infarct_index=2)
    out = metrics(seg_mask)
    jax.block_until_ready(out["infarct_area"])
    jax.block_until_ready(out["ratio"])

    # Reference check in plain JAX (same semantics as the PyTorch forward).
    ref_area = seg_mask[:, :, :, 2].sum(axis=(1, 2))
    ref_denom = ref_area + seg_mask[:, :, :, 1].sum(axis=(1, 2))
    ref_ratio = jnp.where(ref_denom == 0.0, 0.0, ref_area / ref_denom)
    assert np.allclose(np.asarray(out["infarct_area"]), np.asarray(ref_area))
    assert np.allclose(np.asarray(out["ratio"]), np.asarray(ref_ratio))

    print("KERNEL_OK")
</pallas_src>

<mosaic_0001>
module attributes {stable_mosaic.version = 11 : i64} {
  func.func @kernel(%arg0: i32, %arg1: i32, %arg2: memref<8x128xf32, #tpu.memory_space<vmem>>, %arg3: memref<8x1xf32, #tpu.memory_space<vmem>>, %arg4: memref<8x1xf32, #tpu.memory_space<vmem>>, %arg5: memref<2x128xf32, #tpu.memory_space<vmem>>) attributes {dimension_semantics = [#tpu.dimension_semantics<parallel>, #tpu.dimension_semantics<arbitrary>], iteration_bounds = array<i64: 2, 1>, scalar_prefetch = 0 : i64, scratch_operands = 1 : i64, tpu.core_type = #tpu.core_type<tc>, window_params = [{transform_indices = @transform_0, window_bounds = array<i64: 8, 128>}, {transform_indices = @transform_1, window_bounds = array<i64: 8, 1>}, {transform_indices = @transform_2, window_bounds = array<i64: 8, 1>}]} {
    %c0_i32 = arith.constant 0 : i32
    %0 = arith.cmpi eq, %arg1, %c0_i32 : i32
    %1 = arith.extui %0 : i1 to i32
    %c0_i32_0 = arith.constant 0 : i32
    %2 = arith.cmpi ne, %1, %c0_i32_0 : i32
    scf.if %2 {
      %21 = tpu.iota {dimensions = array<i32: 1>} : vector<2x128xi32>
      %22 = tpu.iota {dimensions = array<i32: 0>} : vector<2x128xi32>
      %c0_i32_13 = arith.constant 0 : i32
      %23 = vector.broadcast %c0_i32_13 : i32 to vector<2x128xi32>
      %24 = arith.cmpi eq, %22, %23 : vector<2x128xi32>
      %c2_i32 = arith.constant 2 : i32
      %c1_i32 = arith.constant 1 : i32
      %25 = vector.broadcast %c2_i32 : i32 to vector<2x128xi32>
      %26 = vector.broadcast %c1_i32 : i32 to vector<2x128xi32>
      %27 = arith.select %24, %25, %26 : vector<2x128xi1>, vector<2x128xi32>
      %c4_i32 = arith.constant 4 : i32
      %c0_i32_14 = arith.constant 0 : i32
      %28 = arith.cmpi eq, %c4_i32, %c0_i32_14 : i32
      %c1_i32_15 = arith.constant 1 : i32
      %29 = arith.select %28, %c1_i32_15, %c4_i32 : i32
      %30 = vector.broadcast %29 : i32 to vector<2x128xi32>
      %31 = arith.remsi %21, %30 : vector<2x128xi32>
      %c0_i32_16 = arith.constant 0 : i32
      %32 = vector.broadcast %c0_i32_16 : i32 to vector<2x128xi32>
      %33 = arith.cmpi ne, %31, %32 : vector<2x128xi32>
      %c0_i32_17 = arith.constant 0 : i32
      %34 = vector.broadcast %c0_i32_17 : i32 to vector<2x128xi32>
      %35 = arith.cmpi slt, %31, %34 : vector<2x128xi32>
      %c0_i32_18 = arith.constant 0 : i32
      %36 = arith.cmpi slt, %29, %c0_i32_18 : i32
      %37 = vector.broadcast %36 : i1 to vector<2x128xi1>
      %38 = vector.broadcast %37 : vector<2x128xi1> to vector<2x128xi1>
      %39 = arith.xori %35, %38 : vector<2x128xi1>
      %40 = arith.andi %39, %33 : vector<2x128xi1>
      %41 = vector.broadcast %29 : i32 to vector<2x128xi32>
      %42 = arith.addi %31, %41 : vector<2x128xi32>
      %43 = arith.select %40, %42, %31 : vector<2x128xi1>, vector<2x128xi32>
      %44 = arith.cmpi eq, %43, %27 : vector<2x128xi32>
      %45 = arith.extui %44 : vector<2x128xi1> to vector<2x128xi32>
      %46 = arith.sitofp %45 : vector<2x128xi32> to vector<2x128xf32>
      %c0_19 = arith.constant 0 : index
      %c0_20 = arith.constant 0 : index
      %47 = vector.load %arg5[%c0_19, %c0_20] : memref<2x128xf32, #tpu.memory_space<vmem>>, vector<2x128xf32>
      tpu.vector_store %arg5[%c0_19, %c0_20], %46 {strides = array<i32>} : memref<2x128xf32, #tpu.memory_space<vmem>>, vector<2x128xf32>,
      %cst_21 = arith.constant 0.000000e+00 : f32
      %48 = vector.broadcast %cst_21 : f32 to vector<8x1xf32>
      %c0_22 = arith.constant 0 : index
      %c0_23 = arith.constant 0 : index
      %49 = vector.load %arg3[%c0_22, %c0_23] : memref<8x1xf32, #tpu.memory_space<vmem>>, vector<8x1xf32>
      tpu.vector_store %arg3[%c0_22, %c0_23], %48 {strides = array<i32>} : memref<8x1xf32, #tpu.memory_space<vmem>>, vector<8x1xf32>,
      %cst_24 = arith.constant 0.000000e+00 : f32
      %50 = vector.broadcast %cst_24 : f32 to vector<8x1xf32>
      %c0_25 = arith.constant 0 : index
      %c0_26 = arith.constant 0 : index
      %51 = vector.load %arg4[%c0_25, %c0_26] : memref<8x1xf32, #tpu.memory_space<vmem>>, vector<8x1xf32>
      tpu.vector_store %arg4[%c0_25, %c0_26], %50 {strides = array<i32>} : memref<8x1xf32, #tpu.memory_space<vmem>>, vector<8x1xf32>,
    } else {
    }
    %c0 = arith.constant 0 : index
    %c0_1 = arith.constant 0 : index
    %3 = vector.load %arg2[%c0, %c0_1] : memref<8x128xf32, #tpu.memory_space<vmem>>, vector<8x128xf32>
    %c0_2 = arith.constant 0 : index
    %c0_3 = arith.constant 0 : index
    %4 = vector.load %arg5[%c0_2, %c0_3] : memref<2x128xf32, #tpu.memory_space<vmem>>, vector<2x128xf32>
    %c0_4 = arith.constant 0 : index
    %c0_5 = arith.constant 0 : index
    %5 = vector.load %arg3[%c0_4, %c0_5] : memref<8x1xf32, #tpu.memory_space<vmem>>, vector<8x1xf32>
    %6 = vector.extract_strided_slice %4 {offsets = [0, 0], sizes = [1, 128], strides = [1, 1]} : vector<2x128xf32> to vector<1x128xf32>
    %7 = vector.broadcast %6 : vector<1x128xf32> to vector<8x128xf32>
    %8 = arith.mulf %3, %7 : vector<8x128xf32>
    %cst = arith.constant dense<0.000000e+00> : vector<8xf32>
    %9 = vector.multi_reduction <add>, %8, %cst [1] : vector<8x128xf32> to vector<8xf32>
    %10 = vector.shape_cast %9 : vector<8xf32> to vector<8x1xf32>
    %11 = arith.addf %5, %10 : vector<8x1xf32>
    %c0_6 = arith.constant 0 : index
    %c0_7 = arith.constant 0 : index
    %12 = vector.load %arg3[%c0_6, %c0_7] : memref<8x1xf32, #tpu.memory_space<vmem>>, vector<8x1xf32>
    tpu.vector_store %arg3[%c0_6, %c0_7], %11 {strides = array<i32>} : memref<8x1xf32, #tpu.memory_space<vmem>>, vector<8x1xf32>,
    %c0_8 = arith.constant 0 : index
    %c0_9 = arith.constant 0 : index
    %13 = vector.load %arg4[%c0_8, %c0_9] : memref<8x1xf32, #tpu.memory_space<vmem>>, vector<8x1xf32>
    %14 = vector.extract_strided_slice %4 {offsets = [1, 0], sizes = [1, 128], strides = [1, 1]} : vector<2x128xf32> to vector<1x128xf32>
    %15 = vector.broadcast %14 : vector<1x128xf32> to vector<8x128xf32>
    %16 = arith.mulf %3, %15 : vector<8x128xf32>
    %cst_10 = arith.constant dense<0.000000e+00> : vector<8xf32>
    %17 = vector.multi_reduction <add>, %16, %cst_10 [1] : vector<8x128xf32> to vector<8xf32>
    %18 = vector.shape_cast %17 : vector<8xf32> to vector<8x1xf32>
    %19 = arith.addf %13, %18 : vector<8x1xf32>
    %c0_11 = arith.constant 0 : index
    %c0_12 = arith.constant 0 : index
    %20 = vector.load %arg4[%c0_11, %c0_12] : memref<8x1xf32, #tpu.memory_space<vmem>>, vector<8x1xf32>
    tpu.vector_store %arg4[%c0_11, %c0_12], %19 {strides = array<i32>} : memref<8x1xf32, #tpu.memory_space<vmem>>, vector<8x1xf32>,
    return
  }
  func.func @transform_0(%arg0: i32, %arg1: i32) -> (i32, i32) {
    %c0_i32 = arith.constant 0 : i32
    return %arg0, %arg1 : i32, i32
  }
  func.func @transform_1(%arg0: i32, %arg1: i32) -> (i32, i32) {
    %c0_i32 = arith.constant 0 : i32
    %c0_i32_0 = arith.constant 0 : i32
    return %arg0, %c0_i32 : i32, i32
  }
  func.func @transform_2(%arg0: i32, %arg1: i32) -> (i32, i32) {
    %c0_i32 = arith.constant 0 : i32
    %c0_i32_0 = arith.constant 0 : i32
    return %arg0, %c0_i32 : i32, i32
  }
}

</mosaic_0001>

<llo_original>
// kernel: _infarct_area_ratio.1
$region0: #{_infarct_area_ratio.1}
  #allocation0 [shape = 'u32[]', space=smem, size = 0x4, offset = 0x4, fixed_abs, tag = 'smem constant byte address 0x4 - core index']
  #allocation1 [shape = 'u32[144,128]{1,0:T(1,128)}', space=vmem, size = 0x12000, scoped, tag = 'internal scratch']
  #allocation2 [shape = 'f32[2,128]{1,0:T(2,128)}', space=vmem, size = 0x400, scoped, tag = 'scratch operand']
  %s0 = inlined_call_operand.vmem [shape: f32[16,128], index: 0, kind: input, shape index: {}]
  %s1 = inlined_call_operand.vmem [shape: f32[16,1], index: 1, kind: output, shape index: {0}]
  %s2 = inlined_call_operand.vmem [shape: f32[16,1], index: 2, kind: output, shape index: {1}]
  %3 = xla_tuple %s1, %s2
  %s4 = sld [smem:[#allocation0]]
  $region49: #{_infarct_area_ratio.1} parent=0
    _
  %s6 = ssub.s32 1, %s4
  %s7 = scalar_select 0, %s6, %s4
  loop: start=0, step=1, limit=4
  $region2: #{_infarct_area_ratio.1} parent=0 // loop_pre_header
    _
  $region3: #{_infarct_area_ratio.1} parent=0 // loop_header
    %s9 = sphi 0, %s13
    %p10 = scmp.ge.s32.totalorder %s9, 4
    %s16 = sphi 0, %s28
    %s17 = sphi 0, %s24
    %s18 = sphi 0, %s16
    %s19 = sphi 0, %s17
    %s20 = sphi 0, %s18
    %s21 = sphi 0, %s19
    %s33 = sphi 0, %s35
    %s36 = sphi 0, %s33
    %s37 = sphi 0, %s36
    %s53 = sphi 0, %s37
    %s59 = sphi 0, %s61
    %s62 = sphi 0, %s59
    %s63 = sphi 0, %s62
    %s79 = sphi 0, %s63
    %s85 = sphi 0, %s87
    %s88 = sphi 0, %s85
    %s89 = sphi 0, %s88
    %s105 = sphi 0, %s89
  $region4: #{_infarct_area_ratio.1} parent=0 // loop_header_branch
    %12 = sbr.rel (%p10) target = $region8
  $region5: #{_infarct_area_ratio.1} parent=0 // loop_body
    %s14 = ssub.s32 %s9, 1
    %s15 = ssub.s32 %s9, 2
    %s22 = sadd.s32 1, %s17
    %p23 = scmp.ge.s32.totalorder %s22, 1
    %s24 = scalar_select %p23, 0, %s22
    %s25 = sadd.s32 1, %s16
    %s26 = scalar_select %p23, %s25, %s16
    %p27 = scmp.ge.s32.totalorder %s26, 2
    %s28 = scalar_select %p27, 0, %s26
    %s29 = ssub.s32 %s16, %s28
    %s30 = ssub.s32 %s17, %s24
    %s31 = sor.u32 %s29, %s30
    %p32 = scmp.eq.s32.totalorder %s31, 0
    %s34 = sadd.s32 %s33, 1
    %s35 = scalar_select %p32, %s33, %s34
    %p38 = pneg %p32
    %p39 = scmp.eq.s32.totalorder %s9, 1
    %p40 = por %p38, %p39
    %p41 = scmp.ne.s32.totalorder %s33, %s36
    %p42 = scmp.eq.s32.totalorder %s9, 0
    %p43 = por %p41, %p42
    %p44 = scmp.ne.s32.totalorder %s33, %s36
    %p45 = scmp.eq.s32.totalorder %s14, 1
    %p46 = por %p44, %p45
    %p47 = scmp.ne.s32.totalorder %s36, %s37
    %p48 = scmp.eq.s32.totalorder %s14, 0
    %p49 = por %p47, %p48
    %p50 = scmp.ne.s32.totalorder %s36, %s37
    %p51 = scmp.eq.s32.totalorder %s15, 1
    %p52 = por %p50, %p51
    %p54 = scmp.ne.s32.totalorder %s37, %s53
    %p55 = scmp.eq.s32.totalorder %s15, 0
    %p56 = por %p54, %p55
    %s57 = ssub.s32 %s16, %s28
    %p58 = scmp.eq.s32.totalorder %s57, 0
    %s60 = sadd.s32 %s59, 1
    %s61 = scalar_select %p58, %s59, %s60
    %p64 = pneg %p58
    %p65 = scmp.eq.s32.totalorder %s9, 1
    %p66 = por %p64, %p65
    %p67 = scmp.ne.s32.totalorder %s59, %s62
    %p68 = scmp.eq.s32.totalorder %s9, 0
    %p69 = por %p67, %p68
    %p70 = scmp.ne.s32.totalorder %s59, %s62
    %p71 = scmp.eq.s32.totalorder %s14, 1
    %p72 = por %p70, %p71
    %p73 = scmp.ne.s32.totalorder %s62, %s63
    %p74 = scmp.eq.s32.totalorder %s14, 0
    %p75 = por %p73, %p74
    %p76 = scmp.ne.s32.totalorder %s62, %s63
    %p77 = scmp.eq.s32.totalorder %s15, 1
    %p78 = por %p76, %p77
    %p80 = scmp.ne.s32.totalorder %s63, %s79
    %p81 = scmp.eq.s32.totalorder %s15, 0
    %p82 = por %p80, %p81
    %s83 = ssub.s32 %s16, %s28
    %p84 = scmp.eq.s32.totalorder %s83, 0
    %s86 = sadd.s32 %s85, 1
    %s87 = scalar_select %p84, %s85, %s86
    %p90 = pneg %p84
    %p91 = scmp.eq.s32.totalorder %s9, 1
    %p92 = por %p90, %p91
    %p93 = scmp.ne.s32.totalorder %s85, %s88
    %p94 = scmp.eq.s32.totalorder %s9, 0
    %p95 = por %p93, %p94
    %p96 = scmp.ne.s32.totalorder %s85, %s88
    %p97 = scmp.eq.s32.totalorder %s14, 1
    %p98 = por %p96, %p97
    %p99 = scmp.ne.s32.totalorder %s88, %s89
    %p100 = scmp.eq.s32.totalorder %s14, 0
    %p101 = por %p99, %p100
    %p102 = scmp.ne.s32.totalorder %s88, %s89
    %p103 = scmp.eq.s32.totalorder %s15, 1
    %p104 = por %p102, %p103
    %p106 = scmp.ne.s32.totalorder %s89, %s105
    %p107 = scmp.eq.s32.totalorder %s15, 0
    %p108 = por %p106, %p107
    %p109 = scmp.le.s32.totalorder 1, %s9
    %p110 = scmp.lt.s32.totalorder %s9, 3
    %p111 = pnand %p109, %p110
    %p112 = pneg %p111
    // Predicated region
    $region9: #{_infarct_area_ratio.1} parent=5 // pred_check
      _
    $region10: #{_infarct_area_ratio.1} parent=5 // pred_check_branch
      %114 = sbr.rel (%p111) target = $region12
    $region11: #{_infarct_area_ratio.1} parent=5 // pred_region
      %s115 = ssub.s32 %s9, 1
    $region12: #{_infarct_area_ratio.1} parent=5 // pred_fallthru
      _
    %p116 = scmp.lt.s32.totalorder %s9, 2
    // Predicated region
    $region13: #{_infarct_area_ratio.1} parent=5 // pred_check
      %p117 = pneg %p116
    $region14: #{_infarct_area_ratio.1} parent=5 // pred_check_branch
      %119 = sbr.rel (%p117) target = $region16
    $region15: #{_infarct_area_ratio.1} parent=5 // pred_region
      // Predicated region
      $region17: #{_infarct_area_ratio.1} parent=15 // pred_check
        %p120 = pneg %p43
      $region18: #{_infarct_area_ratio.1} parent=15 // pred_check_branch
        %122 = sbr.rel (%p120) target = $region20
      $region19: #{_infarct_area_ratio.1} parent=15 // pred_region
        %p123 = scmp.lt.s32.totalorder %s16, 1
        %s124 = scalar_select %p123, %s16, 1
        %p125 = scmp.lt.s32.totalorder %s17, 0
        %s126 = scalar_select %p125, %s17, 0
        %s127 = sadd.s32 %s126, %s124
        %s128 = smul.addr %s127, 8
        %s129 = scalar_lea.vmem %s0, %s128
      $region20: #{_infarct_area_ratio.1} parent=15 // pred_fallthru
        _
    $region16: #{_infarct_area_ratio.1} parent=5 // pred_fallthru
      _
    %p130 = scmp.le.s32.totalorder 1, %s9
    %p131 = scmp.lt.s32.totalorder %s9, 3
    %p132 = pnand %p130, %p131
    %p133 = pneg %p132
    // Predicated region
    $region21: #{_infarct_area_ratio.1} parent=5 // pred_check
      _
    $region22: #{_infarct_area_ratio.1} parent=5 // pred_check_branch
      %135 = sbr.rel (%p132) target = $region24
    $region23: #{_infarct_area_ratio.1} parent=5 // pred_region
      %s136 = ssub.s32 %s9, 1
      %p137 = scmp.lt.s32.totalorder %s18, 1
      %s138 = scalar_select %p137, %s18, 1
      %p139 = scmp.lt.s32.totalorder %s19, 0
      %s140 = scalar_select %p139, %s19, 0
      %s141 = sadd.s32 %s140, %s138
      %s142 = smul.addr %s141, 8
      %s143 = scalar_lea.vmem %s0, %s142
      %p144 = pneg %p49
      %p145 = pneg %p46
      %p146 = pneg %p75
      %p147 = pneg %p72
      %p148 = scmp.lt.s32.totalorder %s18, 1
      %s149 = scalar_select %p148, %s18, 1
      %s150 = smul.addr %s149, 8
      %s151 = scalar_lea.vmem %s1, %s150
      %p152 = pneg %p101
      %p153 = pneg %p98
      %p154 = scmp.lt.s32.totalorder %s18, 1
      %s155 = scalar_select %p154, %s18, 1
      %s156 = smul.addr %s155, 8
      %s157 = scalar_lea.vmem %s2, %s156
      %p158 = scmp.lt.s32.totalorder %s18, 1
      %s159 = scalar_select %p158, %s18, 1
      %p160 = scmp.lt.s32.totalorder %s19, 0
      %s161 = scalar_select %p160, %s19, 0
      %s162 = sadd.s32 %s161, %s159
      %s163 = smul.addr %s162, 8
      %s164 = scalar_lea.vmem %s0, %s163
      %p165 = scmp.lt.s32.totalorder %s18, 1
      %s166 = scalar_select %p165, %s18, 1
      %s167 = smul.addr %s166, 8
      %s168 = scalar_lea.vmem %s1, %s167
      %p169 = scmp.lt.s32.totalorder %s18, 1
      %s170 = scalar_select %p169, %s18, 1
      %s171 = smul.addr %s170, 8
      %s172 = scalar_lea.vmem %s2, %s171
      %p173 = scmp.eq.s32.totalorder %s19, 0
      // Predicated region
      $region25: #{_infarct_area_ratio.1} parent=23 // pred_check
        %p174 = pneg %p173
      $region26: #{_infarct_area_ratio.1} parent=23 // pred_check_branch
        %176 = sbr.rel (%p174) target = $region28
      $region27: #{_infarct_area_ratio.1} parent=23 // pred_region
        %v177 = vlaneseq
        %v178 = vand.u32 %v177, 127
        %v179 = vlaneseq
        %v180 = vshrl.u32 %v179, 7
        %vm181 = vcmp.eq.s32.totalorder %v180, 0
        %v182 = vsel %vm181, 2, 1
        %vm183 = vcmp.lt.s32.totalorder %v178, 0
        %v184 = vsub.s32 0, %v178
        %v185 = vsel %vm183, %v184, %v178
        %v186 = vshrl.u32 %v185, 2
        %v187 = vand.u32 %v185, 3
        %v188 = vsub.s32 0, %v187
        %v189 = vsel %vm183, %v188, %v187
        %vm190 = vcmp.ne.s32.totalorder %v189, 0
        %vm191 = vcmp.lt.s32.totalorder %v189, 0
        %vm192 = vmand %vm191, %vm190
        %v193 = vadd.s32 %v189, 4
        %v194 = vsel %vm192, %v193, %v189
        %vm195 = vcmp.eq.s32.totalorder %v194, %v182
        %v196 = vsel %vm195, 1, 0
        %v197 = vcvt.s32.f32 %v196
        %198 = vst [vmem:[#allocation2] sm:$0x3] %v197
        %vm199 = vcmask 7168
        %200 = vst.msk [vmem:[%s168] sm:$0xff] %vm199, 0.0
        %201 = vst.msk [vmem:[%s172] sm:$0xff] %vm199, 0.0
      $region28: #{_infarct_area_ratio.1} parent=23 // pred_fallthru
        _
      %v202 = vld [vmem:[%s164] sm:$0xff]
      %v203 = vld [vmem:[#allocation2] sm:$0x3]
      %v204 = vld [vmem:[%s168] sm:$0xff]
      %v205 = vlaneseq
      %v206 = vshrl.u32 %v205, 7
      %v207 = vsub.s32 0, %v206
      %v208 = vrot.slane %v203, %v207
      %v209 = vmul.f32 %v202, %v208
      %210 = vadd.xlane.f32.xlu0 %v209
      %v211 = vpop.xlane.xlu0 %210
      %v212 = vadd.f32 %v204, %v211
      %vm213 = vcmask 7168
      %214 = vst.msk [vmem:[%s168] sm:$0xff] %vm213, %v212
      %v215 = vld [vmem:[%s172] sm:$0xff]
      %v216 = vlaneseq
      %v217 = vshrl.u32 %v216, 7
      %v218 = vsub.s32 1, %v217
      %v219 = vrot.slane %v203, %v218
      %v220 = vmul.f32 %v202, %v219
      %221 = vadd.xlane.f32.xlu0 %v220
      %v222 = vpop.xlane.xlu0 %221
      %v223 = vadd.f32 %v215, %v222
      %224 = vst.msk [vmem:[%s172] sm:$0xff] %vm213, %v223
      %p225 = scmp.lt.s32.totalorder %s18, 1
      %s226 = scalar_select %p225, %s18, 1
      %s227 = smul.addr %s226, 8
      %s228 = scalar_lea.vmem %s1, %s227
      %p229 = scmp.lt.s32.totalorder %s18, 1
      %s230 = scalar_select %p229, %s18, 1
      %s231 = smul.addr %s230, 8
      %s232 = scalar_lea.vmem %s2, %s231
      // Predicated region
      $region29: #{_infarct_area_ratio.1} parent=23 // pred_check
        %p233 = pneg %p72
      $region30: #{_infarct_area_ratio.1} parent=23 // pred_check_branch
        %235 = sbr.rel (%p233) target = $region32
      $region31: #{_infarct_area_ratio.1} parent=23 // pred_region
        _
      $region32: #{_infarct_area_ratio.1} parent=23 // pred_fallthru
        _
      // Predicated region
      $region33: #{_infarct_area_ratio.1} parent=23 // pred_check
        %p236 = pneg %p98
      $region34: #{_infarct_area_ratio.1} parent=23 // pred_check_branch
        %238 = sbr.rel (%p236) target = $region36
      $region35: #{_infarct_area_ratio.1} parent=23 // pred_region
        _
      $region36: #{_infarct_area_ratio.1} parent=23 // pred_fallthru
        _
    $region24: #{_infarct_area_ratio.1} parent=5 // pred_fallthru
      _
    %p239 = scmp.le.s32.totalorder 2, %s9
    // Predicated region
    $region37: #{_infarct_area_ratio.1} parent=5 // pred_check
      %p240 = pneg %p239
    $region38: #{_infarct_area_ratio.1} parent=5 // pred_check_branch
      %242 = sbr.rel (%p240) target = $region40
    $region39: #{_infarct_area_ratio.1} parent=5 // pred_region
      %s243 = ssub.s32 %s9, 2
      // Predicated region
      $region41: #{_infarct_area_ratio.1} parent=39 // pred_check
        %p244 = pneg %p78
      $region42: #{_infarct_area_ratio.1} parent=39 // pred_check_branch
        %246 = sbr.rel (%p244) target = $region44
      $region43: #{_infarct_area_ratio.1} parent=39 // pred_region
        %p247 = scmp.lt.s32.totalorder %s20, 1
        %s248 = scalar_select %p247, %s20, 1
        %s249 = smul.addr %s248, 8
        %s250 = scalar_lea.vmem %s1, %s249
      $region44: #{_infarct_area_ratio.1} parent=39 // pred_fallthru
        _
      // Predicated region
      $region45: #{_infarct_area_ratio.1} parent=39 // pred_check
        %p251 = pneg %p104
      $region46: #{_infarct_area_ratio.1} parent=39 // pred_check_branch
        %253 = sbr.rel (%p251) target = $region48
      $region47: #{_infarct_area_ratio.1} parent=39 // pred_region
        %p254 = scmp.lt.s32.totalorder %s20, 1
        %s255 = scalar_select %p254, %s20, 1
        %s256 = smul.addr %s255, 8
        %s257 = scalar_lea.vmem %s2, %s256
      $region48: #{_infarct_area_ratio.1} parent=39 // pred_fallthru
        _
    $region40: #{_infarct_area_ratio.1} parent=5 // pred_fallthru
      _
  $region6: #{_infarct_area_ratio.1} parent=0 // loop_footer
    %s13 = sadd.s32 1, %s9
  $region7: #{_infarct_area_ratio.1} parent=0 // loop_footer_branch
    %8 = sbr.rel target = $region3
  $region8: #{_infarct_area_ratio.1} parent=0 // loop_exit
    _

</llo_original>
